<compile_context>
chip_gen: v7x
topology: tpu7x:2x2x1
jax: 0.10.0
libtpu: 0.0.40
codegen_flags: <defaults>
</compile_context>

<pallas_src>
import math

import jax
import jax.numpy as jnp
from jax.experimental import pallas as pl
from jax.experimental.pallas import tpu as pltpu

SMOOTH = 1e-5
MAX_WIDTH = 2048                 # lane extent of the packed layout (multiple of 128)
TARGET_BLOCK_BYTES = 2 << 20     # ~2 MiB per input per grid step
MIN_ROW_BLOCKS = 4               # keep >=4 row blocks when possible (v7x megacore)


def _round_up(a, b):
    return (a + b - 1) // b * b


def _choose_width(n, dp):
    """Largest multiple of 128 dividing dp (<= MAX_WIDTH), preferring widths
    that make the packed row count n*dp//w a multiple of 8 (dense sublanes and
    plenty of rows, which is what enables large row blocks)."""
    k = dp // 128
    divisors = [m * 128 for m in range(1, min(k, MAX_WIDTH // 128) + 1) if k % m == 0]
    dense = [w for w in divisors if (n * (dp // w)) % 8 == 0]
    return max(dense) if dense else max(divisors)


def _choose_row_block(nr, width, in_itemsize):
    """Rows per grid step: multiple of 8, ~TARGET_BLOCK_BYTES per input, and
    keep >= MIN_ROW_BLOCKS steps on the (parallel) row axis when possible."""
    if nr <= 8:
        return nr  # full second-to-last extent — allowed by the (8,128) rule
    target = max(8, (TARGET_BLOCK_BYTES // (width * in_itemsize)) // 8 * 8)
    cap = max(8, (nr // MIN_ROW_BLOCKS) // 8 * 8)
    return min(target, cap)


def _dice_sums_kernel(x_ref, t_ref, num_ref, den_ref):
    x = x_ref[...].astype(jnp.float32)
    t = t_ref[...].astype(jnp.float32)
    num_ref[...] = jnp.sum(x * t, axis=-1, keepdims=True)
    den_ref[...] = jnp.sum(x + t, axis=-1, keepdims=True)


@jax.jit
def dice_loss(inp, target):
    n = inp.shape[0]
    d = math.prod(inp.shape[1:])
    assert math.prod(target.shape[1:]) == d, "input/target flattened sizes differ"

    x2 = inp.reshape(n, d)
    t2 = target.reshape(n, d)

    # Lane padding only if the flattened per-sample size is not 128-aligned
    # (zeros are neutral for both sums).
    dp = _round_up(d, 128)
    if dp != d:
        # TODO(synk): for non-128-aligned sizes this pad is an extra HBM
        # read+write; could be replaced with an unpacked path + in-kernel mask.
        x2 = jnp.pad(x2, ((0, 0), (0, dp - d)))
        t2 = jnp.pad(t2, ((0, 0), (0, dp - d)))

    # Pack each sample into r rows of `width` lanes (pure reshape, no copy).
    width = _choose_width(n, dp)
    r = dp // width
    nr = n * r
    x2 = x2.reshape(nr, width)
    t2 = t2.reshape(nr, width)

    itemsize = max(x2.dtype.itemsize, t2.dtype.itemsize)
    rb = _choose_row_block(nr, width, itemsize)
    n_blocks = pl.cdiv(nr, rb)
    padded_rows = n_blocks * rb  # all output writes stay in-bounds

    in_spec = pl.BlockSpec((rb, width), lambda i: (i, 0))
    out_spec = pl.BlockSpec((rb, 1), lambda i: (i, 0))

    # VMEM: 2 inputs x 2 pipeline buffers x block + headroom (outputs are tiny).
    step_in_bytes = rb * width * (x2.dtype.itemsize + t2.dtype.itemsize)
    vmem_bytes = min(max(2 * step_in_bytes + (2 << 20), 8 << 20), 32 << 20)

    num, den = pl.pallas_call(
        _dice_sums_kernel,
        out_shape=(
            jax.ShapeDtypeStruct((padded_rows, 1), jnp.float32),
            jax.ShapeDtypeStruct((padded_rows, 1), jnp.float32),
        ),
        grid=(n_blocks,),
        in_specs=[in_spec, in_spec],
        out_specs=(out_spec, out_spec),
        compiler_params=pltpu.CompilerParams(
            dimension_semantics=("parallel",),
            vmem_limit_bytes=vmem_bytes,
        ),
    )(x2, t2)

    # Tiny per-sample combine (nr scalars) in the wrapper.
    inter = num[:nr, 0].reshape(n, r).sum(axis=1)
    denom = den[:nr, 0].reshape(n, r).sum(axis=1)
    dice = 2.0 * (inter + SMOOTH) / (denom + SMOOTH)
    return 1.0 - jnp.mean(dice)


def ref_loss(inp, target):
    """Pure-JAX reference mirroring the PyTorch DiceLoss forward."""
    n = inp.shape[0]
    xf = inp.reshape(n, -1).astype(jnp.float32)
    tf = target.reshape(n, -1).astype(jnp.float32)
    inter = (xf * tf).sum(axis=1)
    dice = 2.0 * (inter + SMOOTH) / (xf.sum(axis=1) + tf.sum(axis=1) + SMOOTH)
    return 1.0 - dice.mean()


if __name__ == "__main__":
    key = jax.random.PRNGKey(0)
    k1, k2 = jax.random.split(key)
    N, C, H, W = 2, 4, 16, 16
    x = jax.random.uniform(k1, (N, C, H, W), dtype=jnp.float32)
    target = (jax.random.uniform(k2, (N, C, H, W)) > 0.7).astype(jnp.float32)

    loss = dice_loss(x, target)
    jax.block_until_ready(loss)

    ref = ref_loss(x, target)
    assert jnp.allclose(loss, ref, atol=1e-5, rtol=1e-5), (loss, ref)
    print("KERNEL_OK")
</pallas_src>

<mosaic_0001>
module attributes {stable_mosaic.version = 11 : i64} {
  func.func @_dice_sums_kernel(%arg0: i32, %arg1: memref<8x256xf32, #tpu.memory_space<vmem>>, %arg2: memref<8x256xf32, #tpu.memory_space<vmem>>, %arg3: memref<8x1xf32, #tpu.memory_space<vmem>>, %arg4: memref<8x1xf32, #tpu.memory_space<vmem>>) attributes {dimension_semantics = [#tpu.dimension_semantics<parallel>], iteration_bounds = array<i64: 1>, scalar_prefetch = 0 : i64, scratch_operands = 0 : i64, tpu.core_type = #tpu.core_type<tc>, window_params = [{transform_indices = @transform_0, window_bounds = array<i64: 8, 256>}, {transform_indices = @transform_1, window_bounds = array<i64: 8, 256>}, {transform_indices = @transform_2, window_bounds = array<i64: 8, 1>}, {transform_indices = @transform_3, window_bounds = array<i64: 8, 1>}]} {
    %c0 = arith.constant 0 : index
    %c0_0 = arith.constant 0 : index
    %0 = vector.load %arg1[%c0, %c0_0] : memref<8x256xf32, #tpu.memory_space<vmem>>, vector<8x256xf32>
    %c0_1 = arith.constant 0 : index
    %c0_2 = arith.constant 0 : index
    %1 = vector.load %arg2[%c0_1, %c0_2] : memref<8x256xf32, #tpu.memory_space<vmem>>, vector<8x256xf32>
    %2 = arith.mulf %0, %1 : vector<8x256xf32>
    %cst = arith.constant dense<0.000000e+00> : vector<8xf32>
    %3 = vector.multi_reduction <add>, %2, %cst [1] : vector<8x256xf32> to vector<8xf32>
    %4 = vector.shape_cast %3 : vector<8xf32> to vector<8x1xf32>
    %c0_3 = arith.constant 0 : index
    %c0_4 = arith.constant 0 : index
    %5 = vector.load %arg3[%c0_3, %c0_4] : memref<8x1xf32, #tpu.memory_space<vmem>>, vector<8x1xf32>
    tpu.vector_store %arg3[%c0_3, %c0_4], %4 {strides = array<i32>} : memref<8x1xf32, #tpu.memory_space<vmem>>, vector<8x1xf32>,
    %6 = arith.addf %0, %1 : vector<8x256xf32>
    %cst_5 = arith.constant dense<0.000000e+00> : vector<8xf32>
    %7 = vector.multi_reduction <add>, %6, %cst_5 [1] : vector<8x256xf32> to vector<8xf32>
    %8 = vector.shape_cast %7 : vector<8xf32> to vector<8x1xf32>
    %c0_6 = arith.constant 0 : index
    %c0_7 = arith.constant 0 : index
    %9 = vector.load %arg4[%c0_6, %c0_7] : memref<8x1xf32, #tpu.memory_space<vmem>>, vector<8x1xf32>
    tpu.vector_store %arg4[%c0_6, %c0_7], %8 {strides = array<i32>} : memref<8x1xf32, #tpu.memory_space<vmem>>, vector<8x1xf32>,
    return
  }
  func.func @transform_0(%arg0: i32) -> (i32, i32) {
    %c0_i32 = arith.constant 0 : i32
    %c0_i32_0 = arith.constant 0 : i32
    return %arg0, %c0_i32 : i32, i32
  }
  func.func @transform_1(%arg0: i32) -> (i32, i32) {
    %c0_i32 = arith.constant 0 : i32
    %c0_i32_0 = arith.constant 0 : i32
    return %arg0, %c0_i32 : i32, i32
  }
  func.func @transform_2(%arg0: i32) -> (i32, i32) {
    %c0_i32 = arith.constant 0 : i32
    %c0_i32_0 = arith.constant 0 : i32
    return %arg0, %c0_i32 : i32, i32
  }
  func.func @transform_3(%arg0: i32) -> (i32, i32) {
    %c0_i32 = arith.constant 0 : i32
    %c0_i32_0 = arith.constant 0 : i32
    return %arg0, %c0_i32 : i32, i32
  }
}

</mosaic_0001>

<llo_original>
// kernel: squeeze.3
$region0: #{squeeze.3}
  %s0 = inlined_call_operand.vmem [shape: f32[8], index: 0, kind: input, shape index: {}]
  %s1 = inlined_call_operand.vmem [shape: f32[2,4], index: 1, kind: output, shape index: {}]
  $region1: #{squeeze.3} parent=0
    #allocation0 [shape = 'u8[4096]{0}', space=vmem, size = 0x1000, scoped, tag = 'scoped mem for output reshape']
    #allocation1 [shape = 'u8[4096]{0}', space=vmem, size = 0x1000, scoped, tag = 'scoped mem for input reshape']
    %s3 = sshllo.u32 0, 1
    %v4 = vld [vmem:[%s0] sm:%s3]
    %5 = vst [vmem:[#allocation1] sm:%s3] %v4
    %v6 = vld [vmem:[#allocation1] sm:$0x1]
    %vm7 = vcmask 31744
    %8 = vst.msk [vmem:[#allocation0] sm:$0x1] %vm7, %v6
    %v9 = vld [vmem:[#allocation1] sm:$0x1]
    %10 = vrot.lane.b32.xlu0 %v9, 124
    %v11 = vpop.permute.xlu0 %10
    %vm12 = vcmask 31744
    %s13 = scalar_lea.vmem [#allocation0], 1
    %14 = vst.msk [vmem:[%s13] sm:$0x1] %vm12, %v11
    %s16 = sshllo.u32 0, 2
    %v18 = vld [vmem:[#allocation0] sm:%s16]
    %s19 = sshllo.u32 0, 2
    %20 = vst [vmem:[%s1] sm:%s19] %v18

// kernel: dice_loss.1
$region0: #{dice_loss.1}
  #allocation0 [shape = 'u32[]', space=smem, size = 0x4, offset = 0x4, fixed_abs, tag = 'smem constant byte address 0x4 - core index']
  #allocation1 [shape = 'u32[144,128]{1,0:T(1,128)}', space=vmem, size = 0x12000, scoped, tag = 'internal scratch']
  %s0 = inlined_call_operand.vmem [shape: f32[8,256], index: 0, kind: input, shape index: {}]
  %s1 = inlined_call_operand.vmem [shape: f32[8,256], index: 1, kind: input, shape index: {}]
  %s2 = inlined_call_operand.vmem [shape: f32[8,1], index: 2, kind: output, shape index: {0}]
  %s3 = inlined_call_operand.vmem [shape: f32[8,1], index: 3, kind: output, shape index: {1}]
  %4 = xla_tuple %s2, %s3
  %s5 = sld [smem:[#allocation0]]
  $region26: #{dice_loss.1} parent=0
    _
  %s7 = ssub.s32 1, %s5
  %s8 = scalar_select 0, %s7, %s5
  // Predicated region
  $region2: #{dice_loss.1} parent=0 // pred_check
    _
  $region3: #{dice_loss.1} parent=0 // pred_check_branch
    %10 = sbr.rel (0) target = $region5
  $region4: #{dice_loss.1} parent=0 // pred_region
    _
  $region5: #{dice_loss.1} parent=0 // pred_fallthru
    _
  // Predicated region
  $region6: #{dice_loss.1} parent=0 // pred_check
    _
  $region7: #{dice_loss.1} parent=0 // pred_check_branch
    %12 = sbr.rel (0) target = $region9
  $region8: #{dice_loss.1} parent=0 // pred_region
    _
  $region9: #{dice_loss.1} parent=0 // pred_fallthru
    _
  %v13 = vld [vmem:[%s0] sm:$0xff]
  %v14 = vld [vmem:[%s0 + $0x8] sm:$0xff]
  %v15 = vld [vmem:[%s1] sm:$0xff]
  %v16 = vld [vmem:[%s1 + $0x8] sm:$0xff]
  %v17 = vmul.f32 %v13, %v15
  %v18 = vmul.f32 %v14, %v16
  %v19 = vadd.f32 %v17, %v18
  %20 = vadd.xlane.f32.xlu0 %v19
  %v21 = vpop.xlane.xlu0 %20
  %vm22 = vcmask 7168
  %23 = vst.msk [vmem:[%s2] sm:$0xff] %vm22, %v21
  %v24 = vadd.f32 %v13, %v15
  %v25 = vadd.f32 %v14, %v16
  %v26 = vadd.f32 %v24, %v25
  %27 = vadd.xlane.f32.xlu0 %v26
  %v28 = vpop.xlane.xlu0 %27
  %29 = vst.msk [vmem:[%s3] sm:$0xff] %vm22, %v28
  // Predicated region
  $region10: #{dice_loss.1} parent=0 // pred_check
    _
  $region11: #{dice_loss.1} parent=0 // pred_check_branch
    %31 = sbr.rel (0) target = $region13
  $region12: #{dice_loss.1} parent=0 // pred_region
    _
  $region13: #{dice_loss.1} parent=0 // pred_fallthru
    _
  // Predicated region
  $region14: #{dice_loss.1} parent=0 // pred_check
    _
  $region15: #{dice_loss.1} parent=0 // pred_check_branch
    %33 = sbr.rel (0) target = $region17
  $region16: #{dice_loss.1} parent=0 // pred_region
    _
  $region17: #{dice_loss.1} parent=0 // pred_fallthru
    _
  // Predicated region
  $region18: #{dice_loss.1} parent=0 // pred_check
    _
  $region19: #{dice_loss.1} parent=0 // pred_check_branch
    %35 = sbr.rel (0) target = $region21
  $region20: #{dice_loss.1} parent=0 // pred_region
    _
  $region21: #{dice_loss.1} parent=0 // pred_fallthru
    _
  // Predicated region
  $region22: #{dice_loss.1} parent=0 // pred_check
    _
  $region23: #{dice_loss.1} parent=0 // pred_check_branch
    %37 = sbr.rel (0) target = $region25
  $region24: #{dice_loss.1} parent=0 // pred_region
    _
  $region25: #{dice_loss.1} parent=0 // pred_fallthru
    _

</llo_original>
